<compile_context>
chip_gen: v7x
topology: tpu7x:2x2x1
jax: 0.10.0
libtpu: 0.0.40
codegen_flags: <defaults>
</compile_context>

<pallas_src>
import functools

import jax
import jax.numpy as jnp
from jax.experimental import pallas as pl
from jax.experimental.pallas import tpu as pltpu


def _miou_kernel(x_ref, t_ref, inter_ref, union_ref, acc_i, acc_u, *,
                 n_classes, needs_mask):
    # x_ref:     (1, C, T, 128)  logits (native dtype), one spatial tile
    # t_ref:     (1, T, 128)     int32 labels (-1 marks padded pixels)
    # inter_ref: (1, C, 128)     per-lane partial sums of p * onehot
    # union_ref: (1, C, 128)     per-lane partial sums of p + onehot - p*onehot
    # acc_i/u:   (C, 8, 128)     f32 accumulators, persist across the k axis
    k = pl.program_id(1)
    T = t_ref.shape[1]
    n_sub = T // 8

    @pl.when(k == 0)
    def _():
        acc_i[...] = jnp.zeros_like(acc_i)
        acc_u[...] = jnp.zeros_like(acc_u)

    t = t_ref[0]                                        # (T, 128) int32

    # Softmax over the class axis: elementwise across the C leading slabs.
    xs = [x_ref[0, c].astype(jnp.float32) for c in range(n_classes)]
    m = xs[0]
    for c in range(1, n_classes):
        m = jnp.maximum(m, xs[c])
    es = [jnp.exp(xs[c] - m) for c in range(n_classes)]
    denom = es[0]
    for c in range(1, n_classes):
        denom = denom + es[c]
    inv = pl.reciprocal(denom, approx=False)            # one recip, C multiplies
    if needs_mask:
        # Fold the validity mask into the shared reciprocal once: every p_c
        # becomes 0 on padded pixels (label is -1 there, so onehot is 0 too).
        inv = inv * (t >= 0).astype(jnp.float32)

    for c in range(n_classes):
        p_c = es[c] * inv                               # softmax prob of class c
        is_c = t == c                                   # one-hot as a predicate
        i_c = jnp.where(is_c, p_c, 0.0)                 # p * onehot
        u_c = jnp.where(is_c, 1.0, p_c)                 # p + onehot - p*onehot
        # Fold (T, 128) -> (8, 128) with a VALU chain of 8-row slabs before
        # touching the VMEM accumulators (one tiny store per class per step).
        i_f = i_c[0:8, :]
        u_f = u_c[0:8, :]
        for s in range(1, n_sub):
            i_f = i_f + i_c[8 * s:8 * (s + 1), :]
            u_f = u_f + u_c[8 * s:8 * (s + 1), :]
        acc_i[c] = acc_i[c] + i_f
        acc_u[c] = acc_u[c] + u_f

    @pl.when(k == pl.num_programs(1) - 1)
    def _():
        for c in range(n_classes):
            inter_ref[0, c:c + 1, :] = jnp.sum(acc_i[c], axis=0, keepdims=True)
            union_ref[0, c:c + 1, :] = jnp.sum(acc_u[c], axis=0, keepdims=True)


def miou_loss(inputs, target, n_classes=2, *, block_bytes=1024 * 1024):
    """inputs: (N, C, H, W) float logits, target: (N, H, W) int labels."""
    N, C, H, W = inputs.shape
    assert C == n_classes
    HW = H * W

    itemsize = jnp.dtype(inputs.dtype).itemsize
    align = max(8, 32 // itemsize)                      # sublane tile for dtype
    R0 = -(-HW // 128)                                  # rows of 128 lanes
    # Tile rows: multiple of `align`, sized so one x block is ~block_bytes.
    t_budget = max(align, (block_bytes // (C * 128 * itemsize)) // align * align)
    if R0 <= t_budget:
        T = -(-R0 // align) * align
        R = T
    else:
        T = t_budget
        R = -(-R0 // T) * T
    HWp = R * 128
    needs_mask = HWp != HW

    x = inputs.reshape(N, C, HW)                        # native dtype, no copy
    t = target.reshape(N, HW).astype(jnp.int32)
    if needs_mask:
        x = jnp.pad(x, ((0, 0), (0, 0), (0, HWp - HW)))
        t = jnp.pad(t, ((0, 0), (0, HWp - HW)), constant_values=-1)
    x = x.reshape(N, C, R, 128)
    t = t.reshape(N, R, 128)

    kernel = functools.partial(_miou_kernel, n_classes=C, needs_mask=needs_mask)

    inter_p, union_p = pl.pallas_call(
        kernel,
        grid=(N, R // T),
        in_specs=[
            pl.BlockSpec((1, C, T, 128), lambda n, k: (n, 0, k, 0)),
            pl.BlockSpec((1, T, 128), lambda n, k: (n, k, 0)),
        ],
        out_specs=[
            pl.BlockSpec((1, C, 128), lambda n, k: (n, 0, 0)),
            pl.BlockSpec((1, C, 128), lambda n, k: (n, 0, 0)),
        ],
        out_shape=[
            jax.ShapeDtypeStruct((N, C, 128), jnp.float32),
            jax.ShapeDtypeStruct((N, C, 128), jnp.float32),
        ],
        scratch_shapes=[
            pltpu.VMEM((C, 8, 128), jnp.float32),
            pltpu.VMEM((C, 8, 128), jnp.float32),
        ],
        compiler_params=pltpu.CompilerParams(
            dimension_semantics=("parallel", "arbitrary")),
    )(x, t)

    # Tiny O(N*C) glue: finish the lane reduction, take the ratio and the mean.
    inter = jnp.sum(inter_p, axis=-1)                   # (N, C)
    union = jnp.sum(union_p, axis=-1)                   # (N, C)
    loss = inter / union
    return 1.0 - jnp.mean(loss)


def _miou_loss_ref(inputs, target, n_classes=2):
    # pure-JAX reference mirroring the PyTorch forward
    N, C, H, W = inputs.shape
    p = jax.nn.softmax(inputs.astype(jnp.float32), axis=1)
    onehot = jax.nn.one_hot(target, n_classes, axis=1, dtype=jnp.float32)
    inter = (p * onehot).reshape(N, C, -1).sum(axis=2)
    union = (p + onehot - p * onehot).reshape(N, C, -1).sum(axis=2)
    return 1.0 - jnp.mean(inter / union)


if __name__ == "__main__":
    key = jax.random.PRNGKey(0)

    # Case 1: small image (padding + mask path, single tile).
    k_x, k_t, key = jax.random.split(key, 3)
    N, C, H, W = 2, 4, 16, 16
    inputs = jax.random.normal(k_x, (N, C, H, W), dtype=jnp.float32)
    target = jax.random.randint(k_t, (N, H, W), 0, C, dtype=jnp.int32)
    out = jax.block_until_ready(miou_loss(inputs, target, n_classes=C))
    ref = jax.block_until_ready(_miou_loss_ref(inputs, target, n_classes=C))
    assert jnp.allclose(out, ref, atol=1e-5, rtol=1e-5), (out, ref)

    # Case 2: H*W not a multiple of 128 (padding + mask path, odd sizes).
    k_x, k_t, key = jax.random.split(key, 3)
    N2, C2, H2, W2 = 1, 3, 10, 10
    inputs2 = jax.random.normal(k_x, (N2, C2, H2, W2), dtype=jnp.float32)
    target2 = jax.random.randint(k_t, (N2, H2, W2), 0, C2, dtype=jnp.int32)
    out2 = jax.block_until_ready(miou_loss(inputs2, target2, n_classes=C2))
    ref2 = jax.block_until_ready(_miou_loss_ref(inputs2, target2, n_classes=C2))
    assert jnp.allclose(out2, ref2, atol=1e-5, rtol=1e-5), (out2, ref2)

    # Case 3: tile-aligned image; small block_bytes forces multiple k steps to
    # exercise the cross-tile accumulator path (no padding / no mask).
    k_x, k_t, key = jax.random.split(key, 3)
    N3, C3, H3, W3 = 1, 4, 64, 64
    inputs3 = jax.random.normal(k_x, (N3, C3, H3, W3), dtype=jnp.float32)
    target3 = jax.random.randint(k_t, (N3, H3, W3), 0, C3, dtype=jnp.int32)
    out3a = jax.block_until_ready(
        miou_loss(inputs3, target3, n_classes=C3, block_bytes=16 * 1024))
    out3b = jax.block_until_ready(miou_loss(inputs3, target3, n_classes=C3))
    ref3 = jax.block_until_ready(_miou_loss_ref(inputs3, target3, n_classes=C3))
    assert jnp.allclose(out3a, ref3, atol=1e-5, rtol=1e-5), (out3a, ref3)
    assert jnp.allclose(out3b, ref3, atol=1e-5, rtol=1e-5), (out3b, ref3)

    print("KERNEL_OK")
</pallas_src>

<mosaic_0001>
module attributes {stable_mosaic.version = 11 : i64} {
  func.func @_miou_kernel(%arg0: i32, %arg1: i32, %arg2: memref<1x4x8x128xf32, #tpu.memory_space<vmem>>, %arg3: memref<1x8x128xi32, #tpu.memory_space<vmem>>, %arg4: memref<1x4x128xf32, #tpu.memory_space<vmem>>, %arg5: memref<1x4x128xf32, #tpu.memory_space<vmem>>, %arg6: memref<4x8x128xf32, #tpu.memory_space<vmem>>, %arg7: memref<4x8x128xf32, #tpu.memory_space<vmem>>) attributes {dimension_semantics = [#tpu.dimension_semantics<parallel>, #tpu.dimension_semantics<arbitrary>], iteration_bounds = array<i64: 2, 1>, scalar_prefetch = 0 : i64, scratch_operands = 2 : i64, tpu.core_type = #tpu.core_type<tc>, window_params = [{transform_indices = @transform_0, window_bounds = array<i64: 1, 4, 8, 128>}, {transform_indices = @transform_1, window_bounds = array<i64: 1, 8, 128>}, {transform_indices = @transform_2, window_bounds = array<i64: 1, 4, 128>}, {transform_indices = @transform_3, window_bounds = array<i64: 1, 4, 128>}]} {
    %c0_i32 = arith.constant 0 : i32
    %0 = arith.cmpi eq, %arg1, %c0_i32 : i32
    %1 = arith.extui %0 : i1 to i32
    %c0_i32_0 = arith.constant 0 : i32
    %2 = arith.cmpi ne, %1, %c0_i32_0 : i32
    scf.if %2 {
      %cst_75 = arith.constant 0.000000e+00 : f32
      %112 = vector.broadcast %cst_75 : f32 to vector<4x8x128xf32>
      %c0_76 = arith.constant 0 : index
      %c0_77 = arith.constant 0 : index
      %c0_78 = arith.constant 0 : index
      %113 = vector.load %arg6[%c0_76, %c0_77, %c0_78] : memref<4x8x128xf32, #tpu.memory_space<vmem>>, vector<4x8x128xf32>
      tpu.vector_store %arg6[%c0_76, %c0_77, %c0_78], %112 {strides = array<i32>} : memref<4x8x128xf32, #tpu.memory_space<vmem>>, vector<4x8x128xf32>,
      %cst_79 = arith.constant 0.000000e+00 : f32
      %114 = vector.broadcast %cst_79 : f32 to vector<4x8x128xf32>
      %c0_80 = arith.constant 0 : index
      %c0_81 = arith.constant 0 : index
      %c0_82 = arith.constant 0 : index
      %115 = vector.load %arg7[%c0_80, %c0_81, %c0_82] : memref<4x8x128xf32, #tpu.memory_space<vmem>>, vector<4x8x128xf32>
      tpu.vector_store %arg7[%c0_80, %c0_81, %c0_82], %114 {strides = array<i32>} : memref<4x8x128xf32, #tpu.memory_space<vmem>>, vector<4x8x128xf32>,
    } else {
    }
    %c0 = arith.constant 0 : index
    %c0_1 = arith.constant 0 : index
    %c0_2 = arith.constant 0 : index
    %3 = vector.load %arg3[%c0, %c0_1, %c0_2] : memref<1x8x128xi32, #tpu.memory_space<vmem>>, vector<1x8x128xi32>
    %4 = vector.shape_cast %3 : vector<1x8x128xi32> to vector<8x128xi32>
    %c0_3 = arith.constant 0 : index
    %c0_4 = arith.constant 0 : index
    %c0_5 = arith.constant 0 : index
    %c0_6 = arith.constant 0 : index
    %5 = vector.load %arg2[%c0_3, %c0_4, %c0_5, %c0_6] : memref<1x4x8x128xf32, #tpu.memory_space<vmem>>, vector<1x1x8x128xf32>
    %6 = vector.shape_cast %5 : vector<1x1x8x128xf32> to vector<8x128xf32>
    %c0_7 = arith.constant 0 : index
    %c1 = arith.constant 1 : index
    %c0_8 = arith.constant 0 : index
    %c0_9 = arith.constant 0 : index
    %7 = vector.load %arg2[%c0_7, %c1, %c0_8, %c0_9] : memref<1x4x8x128xf32, #tpu.memory_space<vmem>>, vector<1x1x8x128xf32>
    %8 = vector.shape_cast %7 : vector<1x1x8x128xf32> to vector<8x128xf32>
    %c0_10 = arith.constant 0 : index
    %c2 = arith.constant 2 : index
    %c0_11 = arith.constant 0 : index
    %c0_12 = arith.constant 0 : index
    %9 = vector.load %arg2[%c0_10, %c2, %c0_11, %c0_12] : memref<1x4x8x128xf32, #tpu.memory_space<vmem>>, vector<1x1x8x128xf32>
    %10 = vector.shape_cast %9 : vector<1x1x8x128xf32> to vector<8x128xf32>
    %c0_13 = arith.constant 0 : index
    %c3 = arith.constant 3 : index
    %c0_14 = arith.constant 0 : index
    %c0_15 = arith.constant 0 : index
    %11 = vector.load %arg2[%c0_13, %c3, %c0_14, %c0_15] : memref<1x4x8x128xf32, #tpu.memory_space<vmem>>, vector<1x1x8x128xf32>
    %12 = vector.shape_cast %11 : vector<1x1x8x128xf32> to vector<8x128xf32>
    %13 = arith.maximumf %6, %8 : vector<8x128xf32>
    %14 = arith.maximumf %13, %10 : vector<8x128xf32>
    %15 = arith.maximumf %14, %12 : vector<8x128xf32>
    %16 = arith.subf %6, %15 : vector<8x128xf32>
    %17 = math.exp %16 : vector<8x128xf32>
    %18 = arith.subf %8, %15 : vector<8x128xf32>
    %19 = math.exp %18 : vector<8x128xf32>
    %20 = arith.subf %10, %15 : vector<8x128xf32>
    %21 = math.exp %20 : vector<8x128xf32>
    %22 = arith.subf %12, %15 : vector<8x128xf32>
    %23 = math.exp %22 : vector<8x128xf32>
    %24 = arith.addf %17, %19 : vector<8x128xf32>
    %25 = arith.addf %24, %21 : vector<8x128xf32>
    %26 = arith.addf %25, %23 : vector<8x128xf32>
    %27 = tpu.reciprocal %26 : vector<8x128xf32> -> vector<8x128xf32>
    %c0_i32_16 = arith.constant 0 : i32
    %28 = vector.broadcast %c0_i32_16 : i32 to vector<8x128xi32>
    %29 = arith.cmpi sge, %4, %28 : vector<8x128xi32>
    %30 = arith.extui %29 : vector<8x128xi1> to vector<8x128xi32>
    %31 = arith.sitofp %30 : vector<8x128xi32> to vector<8x128xf32>
    %32 = arith.mulf %27, %31 : vector<8x128xf32>
    %33 = arith.mulf %17, %32 : vector<8x128xf32>
    %c0_i32_17 = arith.constant 0 : i32
    %34 = vector.broadcast %c0_i32_17 : i32 to vector<8x128xi32>
    %35 = arith.cmpi eq, %4, %34 : vector<8x128xi32>
    %cst = arith.constant 0.000000e+00 : f32
    %36 = vector.broadcast %cst : f32 to vector<8x128xf32>
    %37 = arith.select %35, %33, %36 : vector<8x128xi1>, vector<8x128xf32>
    %cst_18 = arith.constant 1.000000e+00 : f32
    %38 = vector.broadcast %cst_18 : f32 to vector<8x128xf32>
    %39 = arith.select %35, %38, %33 : vector<8x128xi1>, vector<8x128xf32>
    %c0_19 = arith.constant 0 : index
    %c0_20 = arith.constant 0 : index
    %c0_21 = arith.constant 0 : index
    %40 = vector.load %arg6[%c0_19, %c0_20, %c0_21] : memref<4x8x128xf32, #tpu.memory_space<vmem>>, vector<1x8x128xf32>
    %41 = vector.shape_cast %40 : vector<1x8x128xf32> to vector<8x128xf32>
    %42 = arith.addf %41, %37 : vector<8x128xf32>
    %c0_22 = arith.constant 0 : index
    %c0_23 = arith.constant 0 : index
    %c0_24 = arith.constant 0 : index
    %43 = vector.load %arg6[%c0_22, %c0_23, %c0_24] : memref<4x8x128xf32, #tpu.memory_space<vmem>>, vector<1x8x128xf32>
    %44 = vector.shape_cast %43 : vector<1x8x128xf32> to vector<8x128xf32>
    %45 = vector.shape_cast %42 : vector<8x128xf32> to vector<1x8x128xf32>
    tpu.vector_store %arg6[%c0_22, %c0_23, %c0_24], %45 {strides = array<i32>} : memref<4x8x128xf32, #tpu.memory_space<vmem>>, vector<1x8x128xf32>,
    %c0_25 = arith.constant 0 : index
    %c0_26 = arith.constant 0 : index
    %c0_27 = arith.constant 0 : index
    %46 = vector.load %arg7[%c0_25, %c0_26, %c0_27] : memref<4x8x128xf32, #tpu.memory_space<vmem>>, vector<1x8x128xf32>
    %47 = vector.shape_cast %46 : vector<1x8x128xf32> to vector<8x128xf32>
    %48 = arith.addf %47, %39 : vector<8x128xf32>
    %c0_28 = arith.constant 0 : index
    %c0_29 = arith.constant 0 : index
    %c0_30 = arith.constant 0 : index
    %49 = vector.load %arg7[%c0_28, %c0_29, %c0_30] : memref<4x8x128xf32, #tpu.memory_space<vmem>>, vector<1x8x128xf32>
    %50 = vector.shape_cast %49 : vector<1x8x128xf32> to vector<8x128xf32>
    %51 = vector.shape_cast %48 : vector<8x128xf32> to vector<1x8x128xf32>
    tpu.vector_store %arg7[%c0_28, %c0_29, %c0_30], %51 {strides = array<i32>} : memref<4x8x128xf32, #tpu.memory_space<vmem>>, vector<1x8x128xf32>,
    %52 = arith.mulf %19, %32 : vector<8x128xf32>
    %c1_i32 = arith.constant 1 : i32
    %53 = vector.broadcast %c1_i32 : i32 to vector<8x128xi32>
    %54 = arith.cmpi eq, %4, %53 : vector<8x128xi32>
    %cst_31 = arith.constant 0.000000e+00 : f32
    %55 = vector.broadcast %cst_31 : f32 to vector<8x128xf32>
    %56 = arith.select %54, %52, %55 : vector<8x128xi1>, vector<8x128xf32>
    %cst_32 = arith.constant 1.000000e+00 : f32
    %57 = vector.broadcast %cst_32 : f32 to vector<8x128xf32>
    %58 = arith.select %54, %57, %52 : vector<8x128xi1>, vector<8x128xf32>
    %c1_33 = arith.constant 1 : index
    %c0_34 = arith.constant 0 : index
    %c0_35 = arith.constant 0 : index
    %59 = vector.load %arg6[%c1_33, %c0_34, %c0_35] : memref<4x8x128xf32, #tpu.memory_space<vmem>>, vector<1x8x128xf32>
    %60 = vector.shape_cast %59 : vector<1x8x128xf32> to vector<8x128xf32>
    %61 = arith.addf %60, %56 : vector<8x128xf32>
    %c1_36 = arith.constant 1 : index
    %c0_37 = arith.constant 0 : index
    %c0_38 = arith.constant 0 : index
    %62 = vector.load %arg6[%c1_36, %c0_37, %c0_38] : memref<4x8x128xf32, #tpu.memory_space<vmem>>, vector<1x8x128xf32>
    %63 = vector.shape_cast %62 : vector<1x8x128xf32> to vector<8x128xf32>
    %64 = vector.shape_cast %61 : vector<8x128xf32> to vector<1x8x128xf32>
    tpu.vector_store %arg6[%c1_36, %c0_37, %c0_38], %64 {strides = array<i32>} : memref<4x8x128xf32, #tpu.memory_space<vmem>>, vector<1x8x128xf32>,
    %c1_39 = arith.constant 1 : index
    %c0_40 = arith.constant 0 : index
    %c0_41 = arith.constant 0 : index
    %65 = vector.load %arg7[%c1_39, %c0_40, %c0_41] : memref<4x8x128xf32, #tpu.memory_space<vmem>>, vector<1x8x128xf32>
    %66 = vector.shape_cast %65 : vector<1x8x128xf32> to vector<8x128xf32>
    %67 = arith.addf %66, %58 : vector<8x128xf32>
    %c1_42 = arith.constant 1 : index
    %c0_43 = arith.constant 0 : index
    %c0_44 = arith.constant 0 : index
    %68 = vector.load %arg7[%c1_42, %c0_43, %c0_44] : memref<4x8x128xf32, #tpu.memory_space<vmem>>, vector<1x8x128xf32>
    %69 = vector.shape_cast %68 : vector<1x8x128xf32> to vector<8x128xf32>
    %70 = vector.shape_cast %67 : vector<8x128xf32> to vector<1x8x128xf32>
    tpu.vector_store %arg7[%c1_42, %c0_43, %c0_44], %70 {strides = array<i32>} : memref<4x8x128xf32, #tpu.memory_space<vmem>>, vector<1x8x128xf32>,
    %71 = arith.mulf %21, %32 : vector<8x128xf32>
    %c2_i32 = arith.constant 2 : i32
    %72 = vector.broadcast %c2_i32 : i32 to vector<8x128xi32>
    %73 = arith.cmpi eq, %4, %72 : vector<8x128xi32>
    %cst_45 = arith.constant 0.000000e+00 : f32
    %74 = vector.broadcast %cst_45 : f32 to vector<8x128xf32>
    %75 = arith.select %73, %71, %74 : vector<8x128xi1>, vector<8x128xf32>
    %cst_46 = arith.constant 1.000000e+00 : f32
    %76 = vector.broadcast %cst_46 : f32 to vector<8x128xf32>
    %77 = arith.select %73, %76, %71 : vector<8x128xi1>, vector<8x128xf32>
    %c2_47 = arith.constant 2 : index
    %c0_48 = arith.constant 0 : index
    %c0_49 = arith.constant 0 : index
    %78 = vector.load %arg6[%c2_47, %c0_48, %c0_49] : memref<4x8x128xf32, #tpu.memory_space<vmem>>, vector<1x8x128xf32>
    %79 = vector.shape_cast %78 : vector<1x8x128xf32> to vector<8x128xf32>
    %80 = arith.addf %79, %75 : vector<8x128xf32>
    %c2_50 = arith.constant 2 : index
    %c0_51 = arith.constant 0 : index
    %c0_52 = arith.constant 0 : index
    %81 = vector.load %arg6[%c2_50, %c0_51, %c0_52] : memref<4x8x128xf32, #tpu.memory_space<vmem>>, vector<1x8x128xf32>
    %82 = vector.shape_cast %81 : vector<1x8x128xf32> to vector<8x128xf32>
    %83 = vector.shape_cast %80 : vector<8x128xf32> to vector<1x8x128xf32>
    tpu.vector_store %arg6[%c2_50, %c0_51, %c0_52], %83 {strides = array<i32>} : memref<4x8x128xf32, #tpu.memory_space<vmem>>, vector<1x8x128xf32>,
    %c2_53 = arith.constant 2 : index
    %c0_54 = arith.constant 0 : index
    %c0_55 = arith.constant 0 : index
    %84 = vector.load %arg7[%c2_53, %c0_54, %c0_55] : memref<4x8x128xf32, #tpu.memory_space<vmem>>, vector<1x8x128xf32>
    %85 = vector.shape_cast %84 : vector<1x8x128xf32> to vector<8x128xf32>
    %86 = arith.addf %85, %77 : vector<8x128xf32>
    %c2_56 = arith.constant 2 : index
    %c0_57 = arith.constant 0 : index
    %c0_58 = arith.constant 0 : index
    %87 = vector.load %arg7[%c2_56, %c0_57, %c0_58] : memref<4x8x128xf32, #tpu.memory_space<vmem>>, vector<1x8x128xf32>
    %88 = vector.shape_cast %87 : vector<1x8x128xf32> to vector<8x128xf32>
    %89 = vector.shape_cast %86 : vector<8x128xf32> to vector<1x8x128xf32>
    tpu.vector_store %arg7[%c2_56, %c0_57, %c0_58], %89 {strides = array<i32>} : memref<4x8x128xf32, #tpu.memory_space<vmem>>, vector<1x8x128xf32>,
    %90 = arith.mulf %23, %32 : vector<8x128xf32>
    %c3_i32 = arith.constant 3 : i32
    %91 = vector.broadcast %c3_i32 : i32 to vector<8x128xi32>
    %92 = arith.cmpi eq, %4, %91 : vector<8x128xi32>
    %cst_59 = arith.constant 0.000000e+00 : f32
    %93 = vector.broadcast %cst_59 : f32 to vector<8x128xf32>
    %94 = arith.select %92, %90, %93 : vector<8x128xi1>, vector<8x128xf32>
    %cst_60 = arith.constant 1.000000e+00 : f32
    %95 = vector.broadcast %cst_60 : f32 to vector<8x128xf32>
    %96 = arith.select %92, %95, %90 : vector<8x128xi1>, vector<8x128xf32>
    %c3_61 = arith.constant 3 : index
    %c0_62 = arith.constant 0 : index
    %c0_63 = arith.constant 0 : index
    %97 = vector.load %arg6[%c3_61, %c0_62, %c0_63] : memref<4x8x128xf32, #tpu.memory_space<vmem>>, vector<1x8x128xf32>
    %98 = vector.shape_cast %97 : vector<1x8x128xf32> to vector<8x128xf32>
    %99 = arith.addf %98, %94 : vector<8x128xf32>
    %c3_64 = arith.constant 3 : index
    %c0_65 = arith.constant 0 : index
    %c0_66 = arith.constant 0 : index
    %100 = vector.load %arg6[%c3_64, %c0_65, %c0_66] : memref<4x8x128xf32, #tpu.memory_space<vmem>>, vector<1x8x128xf32>
    %101 = vector.shape_cast %100 : vector<1x8x128xf32> to vector<8x128xf32>
    %102 = vector.shape_cast %99 : vector<8x128xf32> to vector<1x8x128xf32>
    tpu.vector_store %arg6[%c3_64, %c0_65, %c0_66], %102 {strides = array<i32>} : memref<4x8x128xf32, #tpu.memory_space<vmem>>, vector<1x8x128xf32>,
    %c3_67 = arith.constant 3 : index
    %c0_68 = arith.constant 0 : index
    %c0_69 = arith.constant 0 : index
    %103 = vector.load %arg7[%c3_67, %c0_68, %c0_69] : memref<4x8x128xf32, #tpu.memory_space<vmem>>, vector<1x8x128xf32>
    %104 = vector.shape_cast %103 : vector<1x8x128xf32> to vector<8x128xf32>
    %105 = arith.addf %104, %96 : vector<8x128xf32>
    %c3_70 = arith.constant 3 : index
    %c0_71 = arith.constant 0 : index
    %c0_72 = arith.constant 0 : index
    %106 = vector.load %arg7[%c3_70, %c0_71, %c0_72] : memref<4x8x128xf32, #tpu.memory_space<vmem>>, vector<1x8x128xf32>
    %107 = vector.shape_cast %106 : vector<1x8x128xf32> to vector<8x128xf32>
    %108 = vector.shape_cast %105 : vector<8x128xf32> to vector<1x8x128xf32>
    tpu.vector_store %arg7[%c3_70, %c0_71, %c0_72], %108 {strides = array<i32>} : memref<4x8x128xf32, #tpu.memory_space<vmem>>, vector<1x8x128xf32>,
    %c0_i32_73 = arith.constant 0 : i32
    %109 = arith.cmpi eq, %arg1, %c0_i32_73 : i32
    %110 = arith.extui %109 : i1 to i32
    %c0_i32_74 = arith.constant 0 : i32
    %111 = arith.cmpi ne, %110, %c0_i32_74 : i32
    scf.if %111 {
      %c0_75 = arith.constant 0 : index
      %c0_76 = arith.constant 0 : index
      %c0_77 = arith.constant 0 : index
      %112 = vector.load %arg6[%c0_75, %c0_76, %c0_77] : memref<4x8x128xf32, #tpu.memory_space<vmem>>, vector<1x8x128xf32>
      %113 = vector.shape_cast %112 : vector<1x8x128xf32> to vector<8x128xf32>
      %cst_78 = arith.constant dense<0.000000e+00> : vector<128xf32>
      %114 = vector.multi_reduction <add>, %113, %cst_78 [0] : vector<8x128xf32> to vector<128xf32>
      %115 = vector.shape_cast %114 : vector<128xf32> to vector<1x128xf32>
      %c0_79 = arith.constant 0 : index
      %c0_80 = arith.constant 0 : index
      %c0_81 = arith.constant 0 : index
      %116 = vector.load %arg4[%c0_79, %c0_80, %c0_81] : memref<1x4x128xf32, #tpu.memory_space<vmem>>, vector<1x1x128xf32>
      %117 = vector.shape_cast %116 : vector<1x1x128xf32> to vector<1x128xf32>
      %118 = vector.shape_cast %115 : vector<1x128xf32> to vector<1x1x128xf32>
      tpu.vector_store %arg4[%c0_79, %c0_80, %c0_81], %118 {strides = array<i32>} : memref<1x4x128xf32, #tpu.memory_space<vmem>>, vector<1x1x128xf32>,
      %c0_82 = arith.constant 0 : index
      %c0_83 = arith.constant 0 : index
      %c0_84 = arith.constant 0 : index
      %119 = vector.load %arg7[%c0_82, %c0_83, %c0_84] : memref<4x8x128xf32, #tpu.memory_space<vmem>>, vector<1x8x128xf32>
      %120 = vector.shape_cast %119 : vector<1x8x128xf32> to vector<8x128xf32>
      %cst_85 = arith.constant dense<0.000000e+00> : vector<128xf32>
      %121 = vector.multi_reduction <add>, %120, %cst_85 [0] : vector<8x128xf32> to vector<128xf32>
      %122 = vector.shape_cast %121 : vector<128xf32> to vector<1x128xf32>
      %c0_86 = arith.constant 0 : index
      %c0_87 = arith.constant 0 : index
      %c0_88 = arith.constant 0 : index
      %123 = vector.load %arg5[%c0_86, %c0_87, %c0_88] : memref<1x4x128xf32, #tpu.memory_space<vmem>>, vector<1x1x128xf32>
      %124 = vector.shape_cast %123 : vector<1x1x128xf32> to vector<1x128xf32>
      %125 = vector.shape_cast %122 : vector<1x128xf32> to vector<1x1x128xf32>
      tpu.vector_store %arg5[%c0_86, %c0_87, %c0_88], %125 {strides = array<i32>} : memref<1x4x128xf32, #tpu.memory_space<vmem>>, vector<1x1x128xf32>,
      %c1_89 = arith.constant 1 : index
      %c0_90 = arith.constant 0 : index
      %c0_91 = arith.constant 0 : index
      %126 = vector.load %arg6[%c1_89, %c0_90, %c0_91] : memref<4x8x128xf32, #tpu.memory_space<vmem>>, vector<1x8x128xf32>
      %127 = vector.shape_cast %126 : vector<1x8x128xf32> to vector<8x128xf32>
      %cst_92 = arith.constant dense<0.000000e+00> : vector<128xf32>
      %128 = vector.multi_reduction <add>, %127, %cst_92 [0] : vector<8x128xf32> to vector<128xf32>
      %129 = vector.shape_cast %128 : vector<128xf32> to vector<1x128xf32>
      %c0_93 = arith.constant 0 : index
      %c1_94 = arith.constant 1 : index
      %c0_95 = arith.constant 0 : index
      %130 = vector.load %arg4[%c0_93, %c1_94, %c0_95] : memref<1x4x128xf32, #tpu.memory_space<vmem>>, vector<1x1x128xf32>
      %131 = vector.shape_cast %130 : vector<1x1x128xf32> to vector<1x128xf32>
      %132 = vector.shape_cast %129 : vector<1x128xf32> to vector<1x1x128xf32>
      tpu.vector_store %arg4[%c0_93, %c1_94, %c0_95], %132 {strides = array<i32>} : memref<1x4x128xf32, #tpu.memory_space<vmem>>, vector<1x1x128xf32>,
      %c1_96 = arith.constant 1 : index
      %c0_97 = arith.constant 0 : index
      %c0_98 = arith.constant 0 : index
      %133 = vector.load %arg7[%c1_96, %c0_97, %c0_98] : memref<4x8x128xf32, #tpu.memory_space<vmem>>, vector<1x8x128xf32>
      %134 = vector.shape_cast %133 : vector<1x8x128xf32> to vector<8x128xf32>
      %cst_99 = arith.constant dense<0.000000e+00> : vector<128xf32>
      %135 = vector.multi_reduction <add>, %134, %cst_99 [0] : vector<8x128xf32> to vector<128xf32>
      %136 = vector.shape_cast %135 : vector<128xf32> to vector<1x128xf32>
      %c0_100 = arith.constant 0 : index
      %c1_101 = arith.constant 1 : index
      %c0_102 = arith.constant 0 : index
      %137 = vector.load %arg5[%c0_100, %c1_101, %c0_102] : memref<1x4x128xf32, #tpu.memory_space<vmem>>, vector<1x1x128xf32>
      %138 = vector.shape_cast %137 : vector<1x1x128xf32> to vector<1x128xf32>
      %139 = vector.shape_cast %136 : vector<1x128xf32> to vector<1x1x128xf32>
      tpu.vector_store %arg5[%c0_100, %c1_101, %c0_102], %139 {strides = array<i32>} : memref<1x4x128xf32, #tpu.memory_space<vmem>>, vector<1x1x128xf32>,
      %c2_103 = arith.constant 2 : index
      %c0_104 = arith.constant 0 : index
      %c0_105 = arith.constant 0 : index
      %140 = vector.load %arg6[%c2_103, %c0_104, %c0_105] : memref<4x8x128xf32, #tpu.memory_space<vmem>>, vector<1x8x128xf32>
      %141 = vector.shape_cast %140 : vector<1x8x128xf32> to vector<8x128xf32>
      %cst_106 = arith.constant dense<0.000000e+00> : vector<128xf32>
      %142 = vector.multi_reduction <add>, %141, %cst_106 [0] : vector<8x128xf32> to vector<128xf32>
      %143 = vector.shape_cast %142 : vector<128xf32> to vector<1x128xf32>
      %c0_107 = arith.constant 0 : index
      %c2_108 = arith.constant 2 : index
      %c0_109 = arith.constant 0 : index
      %144 = vector.load %arg4[%c0_107, %c2_108, %c0_109] : memref<1x4x128xf32, #tpu.memory_space<vmem>>, vector<1x1x128xf32>
      %145 = vector.shape_cast %144 : vector<1x1x128xf32> to vector<1x128xf32>
      %146 = vector.shape_cast %143 : vector<1x128xf32> to vector<1x1x128xf32>
      tpu.vector_store %arg4[%c0_107, %c2_108, %c0_109], %146 {strides = array<i32>} : memref<1x4x128xf32, #tpu.memory_space<vmem>>, vector<1x1x128xf32>,
      %c2_110 = arith.constant 2 : index
      %c0_111 = arith.constant 0 : index
      %c0_112 = arith.constant 0 : index
      %147 = vector.load %arg7[%c2_110, %c0_111, %c0_112] : memref<4x8x128xf32, #tpu.memory_space<vmem>>, vector<1x8x128xf32>
      %148 = vector.shape_cast %147 : vector<1x8x128xf32> to vector<8x128xf32>
      %cst_113 = arith.constant dense<0.000000e+00> : vector<128xf32>
      %149 = vector.multi_reduction <add>, %148, %cst_113 [0] : vector<8x128xf32> to vector<128xf32>
      %150 = vector.shape_cast %149 : vector<128xf32> to vector<1x128xf32>
      %c0_114 = arith.constant 0 : index
      %c2_115 = arith.constant 2 : index
      %c0_116 = arith.constant 0 : index
      %151 = vector.load %arg5[%c0_114, %c2_115, %c0_116] : memref<1x4x128xf32, #tpu.memory_space<vmem>>, vector<1x1x128xf32>
      %152 = vector.shape_cast %151 : vector<1x1x128xf32> to vector<1x128xf32>
      %153 = vector.shape_cast %150 : vector<1x128xf32> to vector<1x1x128xf32>
      tpu.vector_store %arg5[%c0_114, %c2_115, %c0_116], %153 {strides = array<i32>} : memref<1x4x128xf32, #tpu.memory_space<vmem>>, vector<1x1x128xf32>,
      %c3_117 = arith.constant 3 : index
      %c0_118 = arith.constant 0 : index
      %c0_119 = arith.constant 0 : index
      %154 = vector.load %arg6[%c3_117, %c0_118, %c0_119] : memref<4x8x128xf32, #tpu.memory_space<vmem>>, vector<1x8x128xf32>
      %155 = vector.shape_cast %154 : vector<1x8x128xf32> to vector<8x128xf32>
      %cst_120 = arith.constant dense<0.000000e+00> : vector<128xf32>
      %156 = vector.multi_reduction <add>, %155, %cst_120 [0] : vector<8x128xf32> to vector<128xf32>
      %157 = vector.shape_cast %156 : vector<128xf32> to vector<1x128xf32>
      %c0_121 = arith.constant 0 : index
      %c3_122 = arith.constant 3 : index
      %c0_123 = arith.constant 0 : index
      %158 = vector.load %arg4[%c0_121, %c3_122, %c0_123] : memref<1x4x128xf32, #tpu.memory_space<vmem>>, vector<1x1x128xf32>
      %159 = vector.shape_cast %158 : vector<1x1x128xf32> to vector<1x128xf32>
      %160 = vector.shape_cast %157 : vector<1x128xf32> to vector<1x1x128xf32>
      tpu.vector_store %arg4[%c0_121, %c3_122, %c0_123], %160 {strides = array<i32>} : memref<1x4x128xf32, #tpu.memory_space<vmem>>, vector<1x1x128xf32>,
      %c3_124 = arith.constant 3 : index
      %c0_125 = arith.constant 0 : index
      %c0_126 = arith.constant 0 : index
      %161 = vector.load %arg7[%c3_124, %c0_125, %c0_126] : memref<4x8x128xf32, #tpu.memory_space<vmem>>, vector<1x8x128xf32>
      %162 = vector.shape_cast %161 : vector<1x8x128xf32> to vector<8x128xf32>
      %cst_127 = arith.constant dense<0.000000e+00> : vector<128xf32>
      %163 = vector.multi_reduction <add>, %162, %cst_127 [0] : vector<8x128xf32> to vector<128xf32>
      %164 = vector.shape_cast %163 : vector<128xf32> to vector<1x128xf32>
      %c0_128 = arith.constant 0 : index
      %c3_129 = arith.constant 3 : index
      %c0_130 = arith.constant 0 : index
      %165 = vector.load %arg5[%c0_128, %c3_129, %c0_130] : memref<1x4x128xf32, #tpu.memory_space<vmem>>, vector<1x1x128xf32>
      %166 = vector.shape_cast %165 : vector<1x1x128xf32> to vector<1x128xf32>
      %167 = vector.shape_cast %164 : vector<1x128xf32> to vector<1x1x128xf32>
      tpu.vector_store %arg5[%c0_128, %c3_129, %c0_130], %167 {strides = array<i32>} : memref<1x4x128xf32, #tpu.memory_space<vmem>>, vector<1x1x128xf32>,
    } else {
    }
    return
  }
  func.func @transform_0(%arg0: i32, %arg1: i32) -> (i32, i32, i32, i32) {
    %c0_i32 = arith.constant 0 : i32
    %c0_i32_0 = arith.constant 0 : i32
    %c0_i32_1 = arith.constant 0 : i32
    return %arg0, %c0_i32, %arg1, %c0_i32_0 : i32, i32, i32, i32
  }
  func.func @transform_1(%arg0: i32, %arg1: i32) -> (i32, i32, i32) {
    %c0_i32 = arith.constant 0 : i32
    %c0_i32_0 = arith.constant 0 : i32
    return %arg0, %arg1, %c0_i32 : i32, i32, i32
  }
  func.func @transform_2(%arg0: i32, %arg1: i32) -> (i32, i32, i32) {
    %c0_i32 = arith.constant 0 : i32
    %c0_i32_0 = arith.constant 0 : i32
    %c0_i32_1 = arith.constant 0 : i32
    return %arg0, %c0_i32, %c0_i32_0 : i32, i32, i32
  }
  func.func @transform_3(%arg0: i32, %arg1: i32) -> (i32, i32, i32) {
    %c0_i32 = arith.constant 0 : i32
    %c0_i32_0 = arith.constant 0 : i32
    %c0_i32_1 = arith.constant 0 : i32
    return %arg0, %c0_i32, %c0_i32_0 : i32, i32, i32
  }
}

</mosaic_0001>

<llo_original>
// kernel: tpu_custom_call.1
$region0: #{tpu_custom_call.1}
  #allocation0 [shape = 'u32[]', space=smem, size = 0x4, offset = 0x4, fixed_abs, tag = 'smem constant byte address 0x4 - core index']
  #allocation1 [shape = 'u32[144,128]{1,0:T(1,128)}', space=vmem, size = 0x12000, scoped, tag = 'internal scratch']
  #allocation2 [shape = 'f32[4,8,128]{2,1,0:T(8,128)}', space=vmem, size = 0x4000, scoped, tag = 'scratch operand']
  #allocation3 [shape = 'f32[4,8,128]{2,1,0:T(8,128)}', space=vmem, size = 0x4000, scoped, tag = 'scratch operand']
  %s0 = inlined_call_operand.hbm [shape: f32[2,4,8,128], index: 0, kind: input, shape index: {}]
  %s1 = inlined_call_operand.hbm [shape: s32[2,8,128], index: 1, kind: input, shape index: {}]
  %s2 = inlined_call_operand.hbm [shape: f32[2,4,128], index: 2, kind: output, shape index: {0}]
  %s3 = inlined_call_operand.hbm [shape: f32[2,4,128], index: 3, kind: output, shape index: {1}]
  %4 = xla_tuple %s2, %s3
  %s5 = sld [smem:[#allocation0]]
  $region65: #{tpu_custom_call.1} parent=0
    _
  %s7 = ssub.s32 1, %s5
  %s8 = scalar_select 0, %s7, %s5
  $region1: #{tpu_custom_call.1} parent=0
    #allocation4 [shape = 'u8[32768]{0}', space=vmem, size = 0x8000, scoped, tag = 'input window, operand 0']
    #allocation5 [shape = 's32[2]{0}', space=sflag, size = 0x8, scoped, tag = 'scoped memory for tpu_custom_call.1']
    #allocation6 [shape = 's32[2]{0}', space=sflag, size = 0x8, scoped, tag = 'scoped memory for tpu_custom_call.1']
    #allocation7 [shape = 'u8[8192]{0}', space=vmem, size = 0x2000, scoped, tag = 'input window, operand 1']
    #allocation8 [shape = 's32[2]{0}', space=sflag, size = 0x8, scoped, tag = 'scoped memory for tpu_custom_call.1']
    #allocation9 [shape = 'u8[4096]{0}', space=vmem, size = 0x1000, scoped, tag = 'output window, operand 0']
    #allocation10 [shape = 'u8[4096]{0}', space=vmem, size = 0x1000, scoped, tag = 'output window, operand 1']
    #allocation11 [shape = 's32[2]{0}', space=sflag, size = 0x8, scoped, tag = 'scoped memory for tpu_custom_call.1']
    %9 = vsyncpa [#allocation5], 0
    %s10 = scalar_lea.sflag [#allocation5], 1
    %11 = vsyncpa %s10, 0
    %12 = vsyncpa [#allocation8], 0
    %s13 = scalar_lea.sflag [#allocation8], 1
    %14 = vsyncpa %s13, 0
    %15 = vsyncpa [#allocation6], 0
    %s16 = scalar_lea.sflag [#allocation6], 1
    %17 = vsyncpa %s16, 0
    %18 = vsyncpa [#allocation11], 0
    %s19 = scalar_lea.sflag [#allocation11], 1
    %20 = vsyncpa %s19, 0
    loop: start=0, step=1, limit=4
    $region2: #{tpu_custom_call.1} parent=1 // loop_pre_header
      _
    $region3: #{tpu_custom_call.1} parent=1 // loop_header
      %s22 = sphi 0, %s26
      %p23 = scmp.ge.s32.totalorder %s22, 4
      %s29 = sphi 0, %s41
      %s30 = sphi 0, %s37
      %s31 = sphi 0, %s29
      %s32 = sphi 0, %s30
      %s33 = sphi 0, %s31
      %s34 = sphi 0, %s32
      %s46 = sphi 0, %s48
      %s49 = sphi 0, %s46
      %s50 = sphi 0, %s49
      %s66 = sphi 0, %s50
      %s74 = sphi 0, %s76
      %s77 = sphi 0, %s74
      %s78 = sphi 0, %s77
      %s94 = sphi 0, %s78
      %s100 = sphi 0, %s102
      %s103 = sphi 0, %s100
      %s104 = sphi 0, %s103
      %s120 = sphi 0, %s104
      %s126 = sphi 0, %s128
      %s129 = sphi 0, %s126
      %s130 = sphi 0, %s129
      %s146 = sphi 0, %s130
    $region4: #{tpu_custom_call.1} parent=1 // loop_header_branch
      %25 = sbr.rel (%p23) target = $region8
    $region5: #{tpu_custom_call.1} parent=1 // loop_body
      %s27 = ssub.s32 %s22, 1
      %s28 = ssub.s32 %s22, 2
      %s35 = sadd.s32 1, %s30
      %p36 = scmp.ge.s32.totalorder %s35, 1
      %s37 = scalar_select %p36, 0, %s35
      %s38 = sadd.s32 1, %s29
      %s39 = scalar_select %p36, %s38, %s29
      %p40 = scmp.ge.s32.totalorder %s39, 2
      %s41 = scalar_select %p40, 0, %s39
      %s42 = ssub.s32 %s29, %s41
      %s43 = ssub.s32 %s30, %s37
      %s44 = sor.u32 %s42, %s43
      %p45 = scmp.eq.s32.totalorder %s44, 0
      %s47 = sadd.s32 %s46, 1
      %s48 = scalar_select %p45, %s46, %s47
      %p51 = pneg %p45
      %p52 = scmp.eq.s32.totalorder %s22, 1
      %p53 = por %p51, %p52
      %p54 = scmp.ne.s32.totalorder %s46, %s49
      %p55 = scmp.eq.s32.totalorder %s22, 0
      %p56 = por %p54, %p55
      %p57 = scmp.ne.s32.totalorder %s46, %s49
      %p58 = scmp.eq.s32.totalorder %s27, 1
      %p59 = por %p57, %p58
      %p60 = scmp.ne.s32.totalorder %s49, %s50
      %p61 = scmp.eq.s32.totalorder %s27, 0
      %p62 = por %p60, %p61
      %p63 = scmp.ne.s32.totalorder %s49, %s50
      %p64 = scmp.eq.s32.totalorder %s28, 1
      %p65 = por %p63, %p64
      %p67 = scmp.ne.s32.totalorder %s50, %s66
      %p68 = scmp.eq.s32.totalorder %s28, 0
      %p69 = por %p67, %p68
      %s70 = ssub.s32 %s29, %s41
      %s71 = ssub.s32 %s30, %s37
      %s72 = sor.u32 %s70, %s71
      %p73 = scmp.eq.s32.totalorder %s72, 0
      %s75 = sadd.s32 %s74, 1
      %s76 = scalar_select %p73, %s74, %s75
      %p79 = pneg %p73
      %p80 = scmp.eq.s32.totalorder %s22, 1
      %p81 = por %p79, %p80
      %p82 = scmp.ne.s32.totalorder %s74, %s77
      %p83 = scmp.eq.s32.totalorder %s22, 0
      %p84 = por %p82, %p83
      %p85 = scmp.ne.s32.totalorder %s74, %s77
      %p86 = scmp.eq.s32.totalorder %s27, 1
      %p87 = por %p85, %p86
      %p88 = scmp.ne.s32.totalorder %s77, %s78
      %p89 = scmp.eq.s32.totalorder %s27, 0
      %p90 = por %p88, %p89
      %p91 = scmp.ne.s32.totalorder %s77, %s78
      %p92 = scmp.eq.s32.totalorder %s28, 1
      %p93 = por %p91, %p92
      %p95 = scmp.ne.s32.totalorder %s78, %s94
      %p96 = scmp.eq.s32.totalorder %s28, 0
      %p97 = por %p95, %p96
      %s98 = ssub.s32 %s29, %s41
      %p99 = scmp.eq.s32.totalorder %s98, 0
      %s101 = sadd.s32 %s100, 1
      %s102 = scalar_select %p99, %s100, %s101
      %p105 = pneg %p99
      %p106 = scmp.eq.s32.totalorder %s22, 1
      %p107 = por %p105, %p106
      %p108 = scmp.ne.s32.totalorder %s100, %s103
      %p109 = scmp.eq.s32.totalorder %s22, 0
      %p110 = por %p108, %p109
      %p111 = scmp.ne.s32.totalorder %s100, %s103
      %p112 = scmp.eq.s32.totalorder %s27, 1
      %p113 = por %p111, %p112
      %p114 = scmp.ne.s32.totalorder %s103, %s104
      %p115 = scmp.eq.s32.totalorder %s27, 0
      %p116 = por %p114, %p115
      %p117 = scmp.ne.s32.totalorder %s103, %s104
      %p118 = scmp.eq.s32.totalorder %s28, 1
      %p119 = por %p117, %p118
      %p121 = scmp.ne.s32.totalorder %s104, %s120
      %p122 = scmp.eq.s32.totalorder %s28, 0
      %p123 = por %p121, %p122
      %s124 = ssub.s32 %s29, %s41
      %p125 = scmp.eq.s32.totalorder %s124, 0
      %s127 = sadd.s32 %s126, 1
      %s128 = scalar_select %p125, %s126, %s127
      %p131 = pneg %p125
      %p132 = scmp.eq.s32.totalorder %s22, 1
      %p133 = por %p131, %p132
      %p134 = scmp.ne.s32.totalorder %s126, %s129
      %p135 = scmp.eq.s32.totalorder %s22, 0
      %p136 = por %p134, %p135
      %p137 = scmp.ne.s32.totalorder %s126, %s129
      %p138 = scmp.eq.s32.totalorder %s27, 1
      %p139 = por %p137, %p138
      %p140 = scmp.ne.s32.totalorder %s129, %s130
      %p141 = scmp.eq.s32.totalorder %s27, 0
      %p142 = por %p140, %p141
      %p143 = scmp.ne.s32.totalorder %s129, %s130
      %p144 = scmp.eq.s32.totalorder %s28, 1
      %p145 = por %p143, %p144
      %p147 = scmp.ne.s32.totalorder %s130, %s146
      %p148 = scmp.eq.s32.totalorder %s28, 0
      %p149 = por %p147, %p148
      %p150 = scmp.le.s32.totalorder 1, %s22
      %p151 = scmp.lt.s32.totalorder %s22, 3
      %p152 = pnand %p150, %p151
      %p153 = pneg %p152
      // Predicated region
      $region9: #{tpu_custom_call.1} parent=5 // pred_check
        _
      $region10: #{tpu_custom_call.1} parent=5 // pred_check_branch
        %155 = sbr.rel (%p152) target = $region12
      $region11: #{tpu_custom_call.1} parent=5 // pred_region
        %s156 = ssub.s32 %s22, 1
      $region12: #{tpu_custom_call.1} parent=5 // pred_fallthru
        _
      %p157 = scmp.lt.s32.totalorder %s22, 2
      // Predicated region
      $region13: #{tpu_custom_call.1} parent=5 // pred_check
        %p158 = pneg %p157
      $region14: #{tpu_custom_call.1} parent=5 // pred_check_branch
        %160 = sbr.rel (%p158) target = $region16
      $region15: #{tpu_custom_call.1} parent=5 // pred_region
        // Predicated region
        $region17: #{tpu_custom_call.1} parent=15 // pred_check
          %p161 = pneg %p56
        $region18: #{tpu_custom_call.1} parent=15 // pred_check_branch
          %163 = sbr.rel (%p161) target = $region20
        $region19: #{tpu_custom_call.1} parent=15 // pred_region
          %s164 = sand.u32 %s46, 1
          %s165 = scalar_lea.sflag [#allocation5], %s164
          %s166 = sand.u32 %s46, 1
          %s167 = smul.addr %s166, 32
          %s168 = scalar_lea.vmem [#allocation4], %s167
          %s170 = ssub.s32 512, 512
          %171 = vsyncadd %s165, %s170
          %s172 = smul.addr %s29, 4
          %s173 = sadd.s32 %s30, %s172
          %s174 = smul.addr %s173, 128
          %s175 = scalar_lea.hbm %s0, %s174
          %s176 = sshll.u32 %s168, 4
          %s177 = int_to_ptr.vmem [resolvable:$true] %s176
          %182 = dma.hbm_to_vmem [thread:$0]  %s175, 512, %s177, %s165, 128, 128, 8
        $region20: #{tpu_custom_call.1} parent=15 // pred_fallthru
          _
        // Predicated region
        $region21: #{tpu_custom_call.1} parent=15 // pred_check
          %p183 = pneg %p84
        $region22: #{tpu_custom_call.1} parent=15 // pred_check_branch
          %185 = sbr.rel (%p183) target = $region24
        $region23: #{tpu_custom_call.1} parent=15 // pred_region
          %s186 = sand.u32 %s74, 1
          %s187 = scalar_lea.sflag [#allocation8], %s186
          %s188 = sand.u32 %s74, 1
          %s189 = smul.addr %s188, 8
          %s190 = scalar_lea.vmem [#allocation7], %s189
          %s192 = ssub.s32 128, 128
          %193 = vsyncadd %s187, %s192
          %s194 = sadd.s32 %s30, %s29
          %s195 = smul.addr %s194, 128
          %s196 = scalar_lea.hbm %s1, %s195
          %s198 = sshll.u32 %s190, 4
          %s199 = int_to_ptr.vmem [resolvable:$true] %s198
          %201 = dma.hbm_to_vmem [thread:$0]  %s196, 128, %s199, %s187
        $region24: #{tpu_custom_call.1} parent=15 // pred_fallthru
          _
      $region16: #{tpu_custom_call.1} parent=5 // pred_fallthru
        _
      %p202 = scmp.le.s32.totalorder 1, %s22
      %p203 = scmp.lt.s32.totalorder %s22, 3
      %p204 = pnand %p202, %p203
      %p205 = pneg %p204
      // Predicated region
      $region25: #{tpu_custom_call.1} parent=5 // pred_check
        _
      $region26: #{tpu_custom_call.1} parent=5 // pred_check_branch
        %207 = sbr.rel (%p204) target = $region28
      $region27: #{tpu_custom_call.1} parent=5 // pred_region
        %s208 = ssub.s32 %s22, 1
        %s209 = sand.u32 %s49, 1
        %s210 = scalar_lea.sflag [#allocation5], %s209
        %s211 = sand.u32 %s49, 1
        %s212 = smul.addr %s211, 32
        %s213 = scalar_lea.vmem [#allocation4], %s212
        // Predicated region
        $region29: #{tpu_custom_call.1} parent=27 // pred_check
          %p214 = pneg %p62
        $region30: #{tpu_custom_call.1} parent=27 // pred_check_branch
          %216 = sbr.rel (%p214) target = $region32
        $region31: #{tpu_custom_call.1} parent=27 // pred_region
          %217 = dma.done %s210, 512
        $region32: #{tpu_custom_call.1} parent=27 // pred_fallthru
          _
        %s218 = sand.u32 %s77, 1
        %s219 = scalar_lea.sflag [#allocation8], %s218
        %s220 = sand.u32 %s77, 1
        %s221 = smul.addr %s220, 8
        %s222 = scalar_lea.vmem [#allocation7], %s221
        // Predicated region
        $region33: #{tpu_custom_call.1} parent=27 // pred_check
          %p223 = pneg %p90
        $region34: #{tpu_custom_call.1} parent=27 // pred_check_branch
          %225 = sbr.rel (%p223) target = $region36
        $region35: #{tpu_custom_call.1} parent=27 // pred_region
          %226 = dma.done %s219, 128
        $region36: #{tpu_custom_call.1} parent=27 // pred_fallthru
          _
        %s227 = sand.u32 %s49, 1
        %s228 = scalar_lea.sflag [#allocation5], %s227
        %s229 = sand.u32 %s49, 1
        %s230 = smul.addr %s229, 32
        %s231 = scalar_lea.vmem [#allocation4], %s230
        %p232 = pneg %p62
        %p233 = pneg %p59
        %s234 = sand.u32 %s77, 1
        %s235 = scalar_lea.sflag [#allocation8], %s234
        %s236 = sand.u32 %s77, 1
        %s237 = smul.addr %s236, 8
        %s238 = scalar_lea.vmem [#allocation7], %s237
        %p239 = pneg %p90
        %p240 = pneg %p87
        %p241 = pneg %p116
        %p242 = pneg %p113
        %s243 = sand.u32 %s103, 1
        %s244 = scalar_lea.sflag [#allocation6], %s243
        %s245 = sand.u32 %s103, 1
        %s246 = smul.addr %s245, 4
        %s247 = scalar_lea.vmem [#allocation9], %s246
        %p248 = pneg %p142
        %p249 = pneg %p139
        %s250 = sand.u32 %s129, 1
        %s251 = scalar_lea.sflag [#allocation11], %s250
        %s252 = sand.u32 %s129, 1
        %s253 = smul.addr %s252, 4
        %s254 = scalar_lea.vmem [#allocation10], %s253
        %p255 = scmp.eq.s32.totalorder %s32, 0
        // Predicated region
        $region37: #{tpu_custom_call.1} parent=27 // pred_check
          %p256 = pneg %p255
        $region38: #{tpu_custom_call.1} parent=27 // pred_check_branch
          %258 = sbr.rel (%p256) target = $region40
        $region39: #{tpu_custom_call.1} parent=27 // pred_region
          %259 = vst [vmem:[#allocation2] sm:$0xff] 0.0
          %260 = vst [vmem:[#allocation2 + $0x8] sm:$0xff] 0.0
          %261 = vst [vmem:[#allocation2 + $0x10] sm:$0xff] 0.0
          %262 = vst [vmem:[#allocation2 + $0x18] sm:$0xff] 0.0
          %263 = vst [vmem:[#allocation3] sm:$0xff] 0.0
          %264 = vst [vmem:[#allocation3 + $0x8] sm:$0xff] 0.0
          %265 = vst [vmem:[#allocation3 + $0x10] sm:$0xff] 0.0
          %266 = vst [vmem:[#allocation3 + $0x18] sm:$0xff] 0.0
        $region40: #{tpu_custom_call.1} parent=27 // pred_fallthru
          _
        %v267 = vld [vmem:[%s222] sm:$0xff]
        %v268 = vld [vmem:[%s213] sm:$0xff]
        %s269 = scalar_lea.vmem %s213, 8 [#allocation4]
        %v270 = vld [vmem:[%s269] sm:$0xff]
        %s271 = scalar_lea.vmem %s213, 16 [#allocation4]
        %v272 = vld [vmem:[%s271] sm:$0xff]
        %s273 = scalar_lea.vmem %s213, 24 [#allocation4]
        %v274 = vld [vmem:[%s273] sm:$0xff]
        %v275 = vmax.f32 %v268, %v270
        %v276 = vmax.f32 %v275, %v272
        %v277 = vmax.f32 %v276, %v274
        %v278 = vsub.f32 %v268, %v277
        %v279 = vmul.f32 %v278, 1.442695
        %v280 = vpow.pop %v279
        %v281 = vsub.f32 %v270, %v277
        %v282 = vmul.f32 %v281, 1.442695
        %v283 = vpow.pop %v282
        %v284 = vsub.f32 %v272, %v277
        %v285 = vmul.f32 %v284, 1.442695
        %v286 = vpow.pop %v285
        %v287 = vsub.f32 %v274, %v277
        %v288 = vmul.f32 %v287, 1.442695
        %v289 = vpow.pop %v288
        %v290 = vadd.f32 %v280, %v283
        %v291 = vadd.f32 %v290, %v286
        %v292 = vadd.f32 %v291, %v289
        %v293 = vrcp.pop %v292
        %vm294 = vcmp.ge.s32.totalorder %v267, 0
        %v295 = vsel %vm294, 1, 0
        %v296 = vcvt.s32.f32 %v295
        %v297 = vmul.f32 %v293, %v296
        %v298 = vmul.f32 %v280, %v297
        %vm299 = vcmp.eq.s32.totalorder %v267, 0
        %v300 = vsel %vm299, %v298, 0.0
        %v301 = vsel %vm299, 1.0, %v298
        %v302 = vld [vmem:[#allocation2] sm:$0xff]
        %v303 = vadd.f32 %v302, %v300
        %304 = vst [vmem:[#allocation2] sm:$0xff] %v303
        %v305 = vld [vmem:[#allocation3] sm:$0xff]
        %v306 = vadd.f32 %v305, %v301
        %307 = vst [vmem:[#allocation3] sm:$0xff] %v306
        %v308 = vmul.f32 %v283, %v297
        %vm309 = vcmp.eq.s32.totalorder %v267, 1
        %v310 = vsel %vm309, %v308, 0.0
        %v311 = vsel %vm309, 1.0, %v308
        %s312 = scalar_lea.vmem [#allocation2], 8
        %v313 = vld [vmem:[%s312] sm:$0xff]
        %v314 = vadd.f32 %v313, %v310
        %315 = vst [vmem:[%s312] sm:$0xff] %v314
        %s316 = scalar_lea.vmem [#allocation3], 8
        %v317 = vld [vmem:[%s316] sm:$0xff]
        %v318 = vadd.f32 %v317, %v311
        %319 = vst [vmem:[%s316] sm:$0xff] %v318
        %v320 = vmul.f32 %v286, %v297
        %vm321 = vcmp.eq.s32.totalorder %v267, 2
        %v322 = vsel %vm321, %v320, 0.0
        %v323 = vsel %vm321, 1.0, %v320
        %s324 = scalar_lea.vmem [#allocation2], 16
        %v325 = vld [vmem:[%s324] sm:$0xff]
        %v326 = vadd.f32 %v325, %v322
        %327 = vst [vmem:[%s324] sm:$0xff] %v326
        %s328 = scalar_lea.vmem [#allocation3], 16
        %v329 = vld [vmem:[%s328] sm:$0xff]
        %v330 = vadd.f32 %v329, %v323
        %331 = vst [vmem:[%s328] sm:$0xff] %v330
        %v332 = vmul.f32 %v289, %v297
        %vm333 = vcmp.eq.s32.totalorder %v267, 3
        %v334 = vsel %vm333, %v332, 0.0
        %v335 = vsel %vm333, 1.0, %v332
        %s336 = scalar_lea.vmem [#allocation2], 24
        %v337 = vld [vmem:[%s336] sm:$0xff]
        %v338 = vadd.f32 %v337, %v334
        %339 = vst [vmem:[%s336] sm:$0xff] %v338
        %s340 = scalar_lea.vmem [#allocation3], 24
        %v341 = vld [vmem:[%s340] sm:$0xff]
        %v342 = vadd.f32 %v341, %v335
        %343 = vst [vmem:[%s340] sm:$0xff] %v342
        // Predicated region
        $region41: #{tpu_custom_call.1} parent=27 // pred_check
          %p344 = pneg %p255
        $region42: #{tpu_custom_call.1} parent=27 // pred_check_branch
          %346 = sbr.rel (%p344) target = $region44
        $region43: #{tpu_custom_call.1} parent=27 // pred_region
          %v347 = vld [vmem:[#allocation2] sm:$0xff]
          %v348 = vrot.slane %v347, 4
          %v349 = vadd.f32 %v347, %v348
          %v350 = vrot.slane %v349, 2
          %v351 = vadd.f32 %v349, %v350
          %v352 = vrot.slane %v351, 1
          %v353 = vadd.f32 %v351, %v352
          %354 = vst [vmem:[%s247] sm:$0x1] %v353
          %v355 = vld [vmem:[#allocation3] sm:$0xff]
          %v356 = vrot.slane %v355, 4
          %v357 = vadd.f32 %v355, %v356
          %v358 = vrot.slane %v357, 2
          %v359 = vadd.f32 %v357, %v358
          %v360 = vrot.slane %v359, 1
          %v361 = vadd.f32 %v359, %v360
          %362 = vst [vmem:[%s254] sm:$0x1] %v361
          %v363 = vld [vmem:[%s312] sm:$0xff]
          %v364 = vrot.slane %v363, 4
          %v365 = vadd.f32 %v363, %v364
          %v366 = vrot.slane %v365, 2
          %v367 = vadd.f32 %v365, %v366
          %v368 = vrot.slane %v367, 1
          %v369 = vadd.f32 %v367, %v368
          %370 = vst [vmem:[%s247 + $0x1] sm:$0x1] %v369
          %v371 = vld [vmem:[%s316] sm:$0xff]
          %v372 = vrot.slane %v371, 4
          %v373 = vadd.f32 %v371, %v372
          %v374 = vrot.slane %v373, 2
          %v375 = vadd.f32 %v373, %v374
          %v376 = vrot.slane %v375, 1
          %v377 = vadd.f32 %v375, %v376
          %378 = vst [vmem:[%s254 + $0x1] sm:$0x1] %v377
          %v379 = vld [vmem:[%s324] sm:$0xff]
          %v380 = vrot.slane %v379, 4
          %v381 = vadd.f32 %v379, %v380
          %v382 = vrot.slane %v381, 2
          %v383 = vadd.f32 %v381, %v382
          %v384 = vrot.slane %v383, 1
          %v385 = vadd.f32 %v383, %v384
          %386 = vst [vmem:[%s247 + $0x2] sm:$0x1] %v385
          %v387 = vld [vmem:[%s328] sm:$0xff]
          %v388 = vrot.slane %v387, 4
          %v389 = vadd.f32 %v387, %v388
          %v390 = vrot.slane %v389, 2
          %v391 = vadd.f32 %v389, %v390
          %v392 = vrot.slane %v391, 1
          %v393 = vadd.f32 %v391, %v392
          %394 = vst [vmem:[%s254 + $0x2] sm:$0x1] %v393
          %v395 = vld [vmem:[%s336] sm:$0xff]
          %v396 = vrot.slane %v395, 4
          %v397 = vadd.f32 %v395, %v396
          %v398 = vrot.slane %v397, 2
          %v399 = vadd.f32 %v397, %v398
          %v400 = vrot.slane %v399, 1
          %v401 = vadd.f32 %v399, %v400
          %402 = vst [vmem:[%s247 + $0x3] sm:$0x1] %v401
          %v403 = vld [vmem:[%s340] sm:$0xff]
          %v404 = vrot.slane %v403, 4
          %v405 = vadd.f32 %v403, %v404
          %v406 = vrot.slane %v405, 2
          %v407 = vadd.f32 %v405, %v406
          %v408 = vrot.slane %v407, 1
          %v409 = vadd.f32 %v407, %v408
          %410 = vst [vmem:[%s254 + $0x3] sm:$0x1] %v409
        $region44: #{tpu_custom_call.1} parent=27 // pred_fallthru
          _
        %s411 = sand.u32 %s103, 1
        %s412 = scalar_lea.sflag [#allocation6], %s411
        %s413 = sand.u32 %s103, 1
        %s414 = smul.addr %s413, 4
        %s415 = scalar_lea.vmem [#allocation9], %s414
        %s416 = sand.u32 %s129, 1
        %s417 = scalar_lea.sflag [#allocation11], %s416
        %s418 = sand.u32 %s129, 1
        %s419 = smul.addr %s418, 4
        %s420 = scalar_lea.vmem [#allocation10], %s419
        // Predicated region
        $region45: #{tpu_custom_call.1} parent=27 // pred_check
          %p421 = pneg %p113
        $region46: #{tpu_custom_call.1} parent=27 // pred_check_branch
          %423 = sbr.rel (%p421) target = $region48
        $region47: #{tpu_custom_call.1} parent=27 // pred_region
          %s425 = ssub.s32 64, 64
          %426 = vsyncadd %s412, %s425
          %s427 = smul.addr %s31, 64
          %s428 = scalar_lea.hbm %s2, %s427
          %s430 = sshll.u32 %s415, 4
          %s431 = int_to_ptr.vmem [resolvable:$true] %s430
          %433 = dma.vmem_to_hbm [thread:$0]  %s431, 64, %s428, %s412
        $region48: #{tpu_custom_call.1} parent=27 // pred_fallthru
          _
        // Predicated region
        $region49: #{tpu_custom_call.1} parent=27 // pred_check
          %p434 = pneg %p139
        $region50: #{tpu_custom_call.1} parent=27 // pred_check_branch
          %436 = sbr.rel (%p434) target = $region52
        $region51: #{tpu_custom_call.1} parent=27 // pred_region
          %s438 = ssub.s32 64, 64
          %439 = vsyncadd %s417, %s438
          %s440 = smul.addr %s31, 64
          %s441 = scalar_lea.hbm %s3, %s440
          %s443 = sshll.u32 %s420, 4
          %s444 = int_to_ptr.vmem [resolvable:$true] %s443
          %446 = dma.vmem_to_hbm [thread:$0]  %s444, 64, %s441, %s417
        $region52: #{tpu_custom_call.1} parent=27 // pred_fallthru
          _
      $region28: #{tpu_custom_call.1} parent=5 // pred_fallthru
        _
      %p447 = scmp.le.s32.totalorder 2, %s22
      // Predicated region
      $region53: #{tpu_custom_call.1} parent=5 // pred_check
        %p448 = pneg %p447
      $region54: #{tpu_custom_call.1} parent=5 // pred_check_branch
        %450 = sbr.rel (%p448) target = $region56
      $region55: #{tpu_custom_call.1} parent=5 // pred_region
        %s451 = ssub.s32 %s22, 2
        // Predicated region
        $region57: #{tpu_custom_call.1} parent=55 // pred_check
          %p452 = pneg %p119
        $region58: #{tpu_custom_call.1} parent=55 // pred_check_branch
          %454 = sbr.rel (%p452) target = $region60
        $region59: #{tpu_custom_call.1} parent=55 // pred_region
          %s455 = sand.u32 %s104, 1
          %s456 = scalar_lea.sflag [#allocation6], %s455
          %s457 = sand.u32 %s104, 1
          %s458 = smul.addr %s457, 4
          %s459 = scalar_lea.vmem [#allocation9], %s458
          %460 = dma.done %s456, 64
        $region60: #{tpu_custom_call.1} parent=55 // pred_fallthru
          _
        // Predicated region
        $region61: #{tpu_custom_call.1} parent=55 // pred_check
          %p461 = pneg %p145
        $region62: #{tpu_custom_call.1} parent=55 // pred_check_branch
          %463 = sbr.rel (%p461) target = $region64
        $region63: #{tpu_custom_call.1} parent=55 // pred_region
          %s464 = sand.u32 %s130, 1
          %s465 = scalar_lea.sflag [#allocation11], %s464
          %s466 = sand.u32 %s130, 1
          %s467 = smul.addr %s466, 4
          %s468 = scalar_lea.vmem [#allocation10], %s467
          %469 = dma.done %s465, 64
        $region64: #{tpu_custom_call.1} parent=55 // pred_fallthru
          _
      $region56: #{tpu_custom_call.1} parent=5 // pred_fallthru
        _
    $region6: #{tpu_custom_call.1} parent=1 // loop_footer
      %s26 = sadd.s32 1, %s22
    $region7: #{tpu_custom_call.1} parent=1 // loop_footer_branch
      %21 = sbr.rel target = $region3
    $region8: #{tpu_custom_call.1} parent=1 // loop_exit
      _
    %470 = vsyncpa [#allocation5], 1
    %s471 = scalar_lea.sflag [#allocation5], 1
    %472 = vsyncpa %s471, 1
    %473 = vsyncpa [#allocation8], 1
    %s474 = scalar_lea.sflag [#allocation8], 1
    %475 = vsyncpa %s474, 1
    %476 = vsyncpa [#allocation6], 1
    %s477 = scalar_lea.sflag [#allocation6], 1
    %478 = vsyncpa %s477, 1
    %479 = vsyncpa [#allocation11], 1
    %s480 = scalar_lea.sflag [#allocation11], 1
    %481 = vsyncpa %s480, 1

</llo_original>
